<compile_context>
chip_gen: v6e
topology: v6e:2x2x1
jax: 0.10.0
libtpu: 0.0.40
codegen_flags: <defaults>
</compile_context>

<pallas_src>
import jax
import jax.numpy as jnp
from jax import lax
from jax.experimental import pallas as pl
from jax.experimental.pallas import tpu as pltpu


def _enhancer_kernel(src_ref,                 # VMEM (1, E)  int32 : edge_index[0]
                     x_ref,                   # VMEM (N+E, Dn+De) f32 (stacked, zero-padded)
                     w1_ref, b1_ref,          # VMEM (Dn+De, 2H), (1, 2H)  block-diag layer 1
                     w2_ref, b2_ref,          # VMEM (2H, 2H),    (1, 2H)  block-diag layer 2
                     n_smem,                  # SMEM (1,) int32 : number of nodes N
                     out_ref):                # VMEM (N, 2H)
    N = n_smem[0]
    E = src_ref.shape[1]
    H2 = w2_ref.shape[1]
    H = H2 // 2
    Nn = out_ref.shape[0]                     # static N (== n_smem[0] here)

    # ---- fused 2-layer MLP: one MXU push per layer for both node & edge MLPs
    y1 = jnp.maximum(
        jnp.dot(x_ref[...], w1_ref[...], preferred_element_type=jnp.float32)
        + b1_ref[...], 0.0)                                           # (N+E, 2H)
    y2 = jnp.maximum(
        jnp.dot(y1, w2_ref[...], preferred_element_type=jnp.float32)
        + b2_ref[...], 0.0)                                           # (N+E, 2H)

    node_emb = y2[:Nn, :H]                                            # (N, H)
    edge_emb = y2[Nn:, H:]                                            # (E, H), >= 0 (ReLU)

    # ---- vectorized scatter-max of edge embeddings onto source nodes -------
    # Lane-dense layout: E on the lane axis of the (N, H, E) intermediate.
    edge_emb_t = jnp.transpose(edge_emb)                              # (H, E)  one XLU transpose
    node_ids = lax.broadcasted_iota(jnp.int32, (Nn, E), 0)            # (N, E)
    mask = node_ids == src_ref[...]                                   # (N, E) bool
    # edge_emb >= 0 post-ReLU, so a 0.0 fill both masks out foreign edges and
    # yields 0 for nodes with no outgoing edges (torch.zeros semantics).
    masked = jnp.where(mask[:, None, :], edge_emb_t[None, :, :], 0.0) # (N, H, E)
    agg = jnp.max(masked, axis=-1)                                    # (N, H)

    # single lane-contiguous (N, 2H) output slab
    out_ref[...] = jnp.concatenate([node_emb, agg], axis=1)
    del N  # (kept as SMEM arg for the future tiled/segmented variant)


def node_edge_feature_enhancer(node_features, edge_features, edge_index, params):
    N, Dn = node_features.shape
    E, De = edge_features.shape
    H = params["nw2"].shape[1]
    f32 = jnp.float32

    src = edge_index[0].reshape(1, E).astype(jnp.int32)
    n_nodes = jnp.array([N], jnp.int32)

    # --- stacked, zero-padded MLP input (built host/XLA-side, not in-kernel) --
    x_node = jnp.concatenate([node_features.astype(f32),
                              jnp.zeros((N, De), f32)], axis=1)        # (N, Dn+De)
    x_edge = jnp.concatenate([jnp.zeros((E, Dn), f32),
                              edge_features.astype(f32)], axis=1)      # (E, Dn+De)
    x = jnp.concatenate([x_node, x_edge], axis=0)                      # (N+E, Dn+De)

    # --- fuse the two MLPs into block-diagonal weights (cheap; would be cached
    #     alongside the params in a real model). Off-diagonal blocks MUST stay
    #     exactly zero: they annihilate layer-1 cross-block garbage. ----------
    w1 = jnp.concatenate(
        [jnp.concatenate([params["nw1"], jnp.zeros((Dn, H), f32)], axis=1),
         jnp.concatenate([jnp.zeros((De, H), f32), params["ew1"]], axis=1)],
        axis=0)                                                        # (Dn+De, 2H)
    b1 = jnp.concatenate([params["nb1"], params["eb1"]], axis=1)       # (1, 2H)
    w2 = jnp.concatenate(
        [jnp.concatenate([params["nw2"], jnp.zeros((H, H), f32)], axis=1),
         jnp.concatenate([jnp.zeros((H, H), f32), params["ew2"]], axis=1)],
        axis=0)                                                        # (2H, 2H)
    b2 = jnp.concatenate([params["nb2"], params["eb2"]], axis=1)       # (1, 2H)

    vmem = pl.BlockSpec(memory_space=pltpu.MemorySpace.VMEM)
    smem = pl.BlockSpec(memory_space=pltpu.MemorySpace.SMEM)

    flops = (2 * (N + E) * (Dn + De) * (2 * H)      # fused layer 1
             + 2 * (N + E) * (2 * H) * (2 * H)      # fused layer 2
             + 2 * N * H * E)                       # lane-dense masked max
    bytes_accessed = 4 * ((N + E) * (Dn + De) + E                   # inputs
                          + (Dn + De) * 2 * H + 2 * H
                          + (2 * H) * (2 * H) + 2 * H               # params
                          + N * 2 * H)                              # output

    out = pl.pallas_call(
        _enhancer_kernel,
        out_shape=jax.ShapeDtypeStruct((N, 2 * H), jnp.float32),
        in_specs=[vmem, vmem, vmem, vmem, vmem, vmem, smem],
        out_specs=vmem,
        cost_estimate=pl.CostEstimate(flops=flops, transcendentals=0,
                                      bytes_accessed=bytes_accessed),
    )(src, x, w1, b1, w2, b2, n_nodes)

    # module semantics: enhanced = [node_emb | aggregated_edge_features]
    return out


def _ref_forward(nf, ef, ei, p):
    """Pure-JAX reference mirroring the PyTorch forward (independent of the kernel)."""
    ne = jnp.maximum(nf @ p["nw1"] + p["nb1"], 0.0)
    ne = jnp.maximum(ne @ p["nw2"] + p["nb2"], 0.0)
    ee = jnp.maximum(ef @ p["ew1"] + p["eb1"], 0.0)
    ee = jnp.maximum(ee @ p["ew2"] + p["eb2"], 0.0)
    src = ei[0]
    N, H = nf.shape[0], ne.shape[1]
    agg = jnp.zeros((N, H), jnp.float32)
    for i in range(N):
        m = src == i
        if bool(m.any()):
            agg = agg.at[i].set(jnp.max(ee[jnp.where(m)[0]], axis=0))
    return jnp.concatenate([ne, agg], axis=1)


if __name__ == "__main__":
    # module config
    node_input_dim = 8
    edge_input_dim = 8
    output_dim = 32
    H = output_dim // 2

    # problem sizes
    N, E = 16, 32

    key = jax.random.PRNGKey(0)
    ks = jax.random.split(key, 12)

    node_features = jax.random.normal(ks[0], (N, node_input_dim), jnp.float32)
    edge_features = jax.random.normal(ks[1], (E, edge_input_dim), jnp.float32)
    src = jax.random.randint(ks[2], (E,), 0, N, jnp.int32)
    dst = jax.random.randint(ks[3], (E,), 0, N, jnp.int32)
    edge_index = jnp.stack([src, dst], axis=0)                  # (2, E)

    # deterministic synthetic params (pre-transposed to (in, out); biases as (1, out))
    params = {
        "nw1": 0.1 * jax.random.normal(ks[4], (node_input_dim, H), jnp.float32),
        "nb1": 0.1 * jax.random.normal(ks[5], (1, H), jnp.float32),
        "nw2": 0.1 * jax.random.normal(ks[6], (H, H), jnp.float32),
        "nb2": 0.1 * jax.random.normal(ks[7], (1, H), jnp.float32),
        "ew1": 0.1 * jax.random.normal(ks[8], (edge_input_dim, H), jnp.float32),
        "eb1": 0.1 * jax.random.normal(ks[9], (1, H), jnp.float32),
        "ew2": 0.1 * jax.random.normal(ks[10], (H, H), jnp.float32),
        "eb2": 0.1 * jax.random.normal(ks[11], (1, H), jnp.float32),
    }

    out = node_edge_feature_enhancer(node_features, edge_features, edge_index, params)
    out = jax.block_until_ready(out)

    ref = _ref_forward(node_features, edge_features, edge_index, params)
    assert out.shape == (N, output_dim)
    assert jnp.allclose(out, ref, atol=1e-4, rtol=1e-4)

    print("KERNEL_OK")
</pallas_src>

<mosaic_0001>
module attributes {stable_mosaic.version = 11 : i64} {
  func.func @_enhancer_kernel(%arg0: memref<1x32xi32, #tpu.memory_space<vmem>>, %arg1: memref<48x16xf32, #tpu.memory_space<vmem>>, %arg2: memref<16x32xf32, #tpu.memory_space<vmem>>, %arg3: memref<1x32xf32, #tpu.memory_space<vmem>>, %arg4: memref<32x32xf32, #tpu.memory_space<vmem>>, %arg5: memref<1x32xf32, #tpu.memory_space<vmem>>, %arg6: memref<1xi32, #tpu.memory_space<smem>>, %arg7: memref<16x32xf32, #tpu.memory_space<vmem>>) attributes {dimension_semantics = [], scalar_prefetch = 0 : i64, scratch_operands = 0 : i64, tpu.core_type = #tpu.core_type<tc>} {
    %c0 = arith.constant 0 : index
    %c0_0 = arith.constant 0 : index
    %0 = vector.load %arg1[%c0, %c0_0] : memref<48x16xf32, #tpu.memory_space<vmem>>, vector<48x16xf32>
    %c0_1 = arith.constant 0 : index
    %c0_2 = arith.constant 0 : index
    %1 = vector.load %arg2[%c0_1, %c0_2] : memref<16x32xf32, #tpu.memory_space<vmem>>, vector<16x32xf32>
    %cst = arith.constant dense<0.000000e+00> : vector<48x32xf32>
    %2 = tpu.matmul %0, %1, %cst {dimension_numbers = #tpu.dot_dimension_numbers<[1], [0], [0], [1], [0, 0, 1, 1], [], []>} : vector<48x16xf32>, vector<16x32xf32>, vector<48x32xf32> -> vector<48x32xf32>
    %c0_3 = arith.constant 0 : index
    %c0_4 = arith.constant 0 : index
    %3 = vector.load %arg3[%c0_3, %c0_4] : memref<1x32xf32, #tpu.memory_space<vmem>>, vector<1x32xf32>
    %4 = vector.broadcast %3 : vector<1x32xf32> to vector<48x32xf32>
    %5 = arith.addf %2, %4 : vector<48x32xf32>
    %cst_5 = arith.constant 0.000000e+00 : f32
    %6 = vector.broadcast %cst_5 : f32 to vector<48x32xf32>
    %7 = arith.maximumf %5, %6 : vector<48x32xf32>
    %c0_6 = arith.constant 0 : index
    %c0_7 = arith.constant 0 : index
    %8 = vector.load %arg4[%c0_6, %c0_7] : memref<32x32xf32, #tpu.memory_space<vmem>>, vector<32x32xf32>
    %cst_8 = arith.constant dense<0.000000e+00> : vector<48x32xf32>
    %9 = tpu.matmul %7, %8, %cst_8 {dimension_numbers = #tpu.dot_dimension_numbers<[1], [0], [0], [1], [0, 0, 1, 1], [], []>} : vector<48x32xf32>, vector<32x32xf32>, vector<48x32xf32> -> vector<48x32xf32>
    %c0_9 = arith.constant 0 : index
    %c0_10 = arith.constant 0 : index
    %10 = vector.load %arg5[%c0_9, %c0_10] : memref<1x32xf32, #tpu.memory_space<vmem>>, vector<1x32xf32>
    %11 = vector.broadcast %10 : vector<1x32xf32> to vector<48x32xf32>
    %12 = arith.addf %9, %11 : vector<48x32xf32>
    %cst_11 = arith.constant 0.000000e+00 : f32
    %13 = vector.broadcast %cst_11 : f32 to vector<48x32xf32>
    %14 = arith.maximumf %12, %13 : vector<48x32xf32>
    %15 = vector.extract_strided_slice %14 {offsets = [0, 0], sizes = [16, 16], strides = [1, 1]} : vector<48x32xf32> to vector<16x16xf32>
    %16 = vector.extract_strided_slice %14 {offsets = [16, 16], sizes = [32, 16], strides = [1, 1]} : vector<48x32xf32> to vector<32x16xf32>
    %17 = tpu.transpose %16, [1, 0] : vector<32x16xf32> -> vector<16x32xf32>
    %18 = tpu.iota {dimensions = array<i32: 0>} : vector<16x32xi32>
    %c0_12 = arith.constant 0 : index
    %c0_13 = arith.constant 0 : index
    %19 = vector.load %arg0[%c0_12, %c0_13] : memref<1x32xi32, #tpu.memory_space<vmem>>, vector<1x32xi32>
    %20 = vector.broadcast %19 : vector<1x32xi32> to vector<16x32xi32>
    %21 = arith.cmpi eq, %18, %20 : vector<16x32xi32>
    %22 = vector.shape_cast %21 : vector<16x32xi1> to vector<16x1x32xi1>
    %23 = vector.shape_cast %17 : vector<16x32xf32> to vector<1x16x32xf32>
    %cst_14 = arith.constant 0.000000e+00 : f32
    %24 = vector.shape_cast %22 : vector<16x1x32xi1> to vector<16x1x32xi1>
    %25 = vector.broadcast %24 : vector<16x1x32xi1> to vector<16x16x32xi1>
    %26 = vector.shape_cast %23 : vector<1x16x32xf32> to vector<1x16x32xf32>
    %27 = vector.broadcast %26 : vector<1x16x32xf32> to vector<16x16x32xf32>
    %28 = vector.broadcast %cst_14 : f32 to vector<16x16x32xf32>
    %29 = arith.select %25, %27, %28 : vector<16x16x32xi1>, vector<16x16x32xf32>
    %cst_15 = arith.constant dense<0xFF800000> : vector<16x16xf32>
    %30 = vector.multi_reduction <maximumf>, %29, %cst_15 [2] : vector<16x16x32xf32> to vector<16x16xf32>
    %31 = tpu.concatenate %15, %30 in 1 : vector<16x16xf32>, vector<16x16xf32> -> vector<16x32xf32>
    %c0_16 = arith.constant 0 : index
    %c0_17 = arith.constant 0 : index
    %32 = vector.load %arg7[%c0_16, %c0_17] : memref<16x32xf32, #tpu.memory_space<vmem>>, vector<16x32xf32>
    tpu.vector_store %arg7[%c0_16, %c0_17], %31 {strides = array<i32>} : memref<16x32xf32, #tpu.memory_space<vmem>>, vector<16x32xf32>,
    return
  }
}

</mosaic_0001>

<llo_original>
// kernel: tpu_custom_call.1
$region0: #{tpu_custom_call.1}
  #allocation0 [shape = 'u32[]', space=smem, size = 0x4, offset = 0x4, fixed_abs, tag = 'smem constant byte address 0x4 - core index']
  #allocation1 [shape = 'u32[144,128]{1,0:T(1,128)}', space=vmem, size = 0x12000, scoped, tag = 'internal scratch']
  #allocation2 [shape = 's32[1]{0:T(128)S(6)}', space=smem, size = 0x200, scoped, tag = 'scoped memory for tpu_custom_call.1']
  %s0 = inlined_call_operand.vmem [shape: s32[1,32], index: 0, kind: input, shape index: {}]
  %s1 = inlined_call_operand.vmem [shape: f32[48,16], index: 1, kind: input, shape index: {}]
  %s2 = inlined_call_operand.vmem [shape: f32[16,32], index: 2, kind: input, shape index: {}]
  %s3 = inlined_call_operand.vmem [shape: f32[1,32], index: 3, kind: input, shape index: {}]
  %s4 = inlined_call_operand.vmem [shape: f32[32,32], index: 4, kind: input, shape index: {}]
  %s5 = inlined_call_operand.vmem [shape: f32[1,32], index: 5, kind: input, shape index: {}]
  %s6 = inlined_call_operand.<no memory space> [shape: s32[1], index: 6, kind: input, shape index: {}]
  %s7 = inlined_call_operand.hbm [shape: f32[16,32], index: 7, kind: output, shape index: {}]
  %s8 = sld [smem:[#allocation0]]
  $region38: #{tpu_custom_call.1} parent=0
    _
  %s10 = ssub.s32 1, %s8
  %s11 = scalar_select 0, %s10, %s8
  %12 = sst [smem:[#allocation2]] %s6
  $region1: #{tpu_custom_call.1} parent=0
    #allocation3 [shape = 'u8[8192]{0}', space=vmem, size = 0x2000, scoped, tag = 'output window, operand 0, single buffered']
    #allocation4 [shape = 's32[1]{0}', space=sflag, size = 0x4, scoped, tag = 'scoped memory for tpu_custom_call.1']
    %13 = vsyncpa [#allocation4], 0
    // Predicated region
    $region2: #{tpu_custom_call.1} parent=1 // pred_check
      _
    $region3: #{tpu_custom_call.1} parent=1 // pred_check_branch
      %15 = sbr.rel (0) target = $region5
    $region4: #{tpu_custom_call.1} parent=1 // pred_region
      _
    $region5: #{tpu_custom_call.1} parent=1 // pred_fallthru
      _
    // Predicated region
    $region6: #{tpu_custom_call.1} parent=1 // pred_check
      _
    $region7: #{tpu_custom_call.1} parent=1 // pred_check_branch
      %17 = sbr.rel (0) target = $region9
    $region8: #{tpu_custom_call.1} parent=1 // pred_region
      _
    $region9: #{tpu_custom_call.1} parent=1 // pred_fallthru
      _
    // Predicated region
    $region10: #{tpu_custom_call.1} parent=1 // pred_check
      _
    $region11: #{tpu_custom_call.1} parent=1 // pred_check_branch
      %19 = sbr.rel (0) target = $region13
    $region12: #{tpu_custom_call.1} parent=1 // pred_region
      _
    $region13: #{tpu_custom_call.1} parent=1 // pred_fallthru
      _
    // Predicated region
    $region14: #{tpu_custom_call.1} parent=1 // pred_check
      _
    $region15: #{tpu_custom_call.1} parent=1 // pred_check_branch
      %21 = sbr.rel (0) target = $region17
    $region16: #{tpu_custom_call.1} parent=1 // pred_region
      _
    $region17: #{tpu_custom_call.1} parent=1 // pred_fallthru
      _
    // Predicated region
    $region18: #{tpu_custom_call.1} parent=1 // pred_check
      _
    $region19: #{tpu_custom_call.1} parent=1 // pred_check_branch
      %23 = sbr.rel (0) target = $region21
    $region20: #{tpu_custom_call.1} parent=1 // pred_region
      _
    $region21: #{tpu_custom_call.1} parent=1 // pred_fallthru
      _
    // Predicated region
    $region22: #{tpu_custom_call.1} parent=1 // pred_check
      _
    $region23: #{tpu_custom_call.1} parent=1 // pred_check_branch
      %25 = sbr.rel (0) target = $region25
    $region24: #{tpu_custom_call.1} parent=1 // pred_region
      _
    $region25: #{tpu_custom_call.1} parent=1 // pred_fallthru
      _
    // Predicated region
    $region26: #{tpu_custom_call.1} parent=1 // pred_check
      _
    $region27: #{tpu_custom_call.1} parent=1 // pred_check_branch
      %27 = sbr.rel (0) target = $region29
    $region28: #{tpu_custom_call.1} parent=1 // pred_region
      _
    $region29: #{tpu_custom_call.1} parent=1 // pred_fallthru
      _
    %v28 = vld [vmem:[%s1] sm:$0xff]
    %v29 = vld [vmem:[%s1 + $0x8] sm:$0xff]
    %v30 = vld [vmem:[%s1 + $0x10] sm:$0xff]
    %v31 = vld [vmem:[%s1 + $0x18] sm:$0xff]
    %v32 = vld [vmem:[%s1 + $0x20] sm:$0xff]
    %v33 = vld [vmem:[%s1 + $0x28] sm:$0xff]
    %v34 = vld [vmem:[%s2] sm:$0xff]
    %v35 = vld [vmem:[%s2 + $0x8] sm:$0xff]
    %v36 = vld [vmem:[%s3] sm:$0x1]
    %v38 = vlaneseq
    %v39 = vshrl.u32 %v38, 7
    %v40 = vsub.s32 0, %v39
    %v41 = vrot.slane %v36, %v40
    %vm43 = vcmask 130048
    %v45 = vsel %vm43, %v28, 0
    %v48 = vsel %vm43, %v29, 0
    %v51 = vsel %vm43, %v30, 0
    %v54 = vsel %vm43, %v31, 0
    %v57 = vsel %vm43, %v32, 0
    %v60 = vsel %vm43, %v33, 0
    %62 = vmatprep.subr.mxu0 0.0
    %63 = vmatpush1.msra.mxu0 0.0
    %64 = vmatprep.subr.mxu0 0.0
    %65 = vmatpush1.msra.mxu0 0.0
    %66 = vmatprep.subr.mxu0 0.0
    %67 = vmatpush1.msra.mxu0 0.0
    %68 = vmatprep.subr.mxu0 0.0
    %69 = vmatpush1.msra.mxu0 0.0
    %70 = vmatprep.subr.mxu0 0.0
    %71 = vmatpush1.msra.mxu0 0.0
    %72 = vmatprep.subr.mxu0 0.0
    %73 = vmatpush1.msra.mxu0 0.0
    %74 = vmatprep.subr.mxu0 0.0
    %75 = vmatpush1.msra.mxu0 0.0
    %76 = vmatprep.subr.mxu0 0.0
    %77 = vmatpush1.msra.mxu0 0.0
    %78 = vmatprep.subr.mxu0 0.0
    %79 = vmatpush1.msra.mxu0 0.0
    %80 = vmatprep.subr.mxu0 0.0
    %81 = vmatpush1.msra.mxu0 0.0
    %82 = vmatprep.subr.mxu0 0.0
    %83 = vmatpush1.msra.mxu0 0.0
    %84 = vmatprep.subr.mxu0 0.0
    %85 = vmatpush1.msra.mxu0 0.0
    %86 = vmatprep.subr.mxu0 0.0
    %87 = vmatpush1.msra.mxu0 0.0
    %88 = vmatprep.subr.mxu0 0.0
    %89 = vmatpush1.msra.mxu0 0.0
    %90 = vmatprep.subr.mxu0 0.0
    %91 = vmatpush1.msra.mxu0 %v35
    %92 = vmatprep.subr.mxu0 0.0
    %93 = vmatpush1.msra.mxu0 %v34
    %94 = vmatprep.subr.mxu0 0.0
    %95 = vmatpush2.msra.mxu0 0.0
    %96 = vmatprep.subr.mxu0 0.0
    %97 = vmatpush2.msra.mxu0 0.0
    %98 = vmatprep.subr.mxu0 0.0
    %99 = vmatpush2.msra.mxu0 0.0
    %100 = vmatprep.subr.mxu0 0.0
    %101 = vmatpush2.msra.mxu0 0.0
    %102 = vmatprep.subr.mxu0 0.0
    %103 = vmatpush2.msra.mxu0 0.0
    %104 = vmatprep.subr.mxu0 0.0
    %105 = vmatpush2.msra.mxu0 0.0
    %106 = vmatprep.subr.mxu0 0.0
    %107 = vmatpush2.msra.mxu0 0.0
    %108 = vmatprep.subr.mxu0 0.0
    %109 = vmatpush2.msra.mxu0 0.0
    %110 = vmatprep.subr.mxu0 0.0
    %111 = vmatpush2.msra.mxu0 0.0
    %112 = vmatprep.subr.mxu0 0.0
    %113 = vmatpush2.msra.mxu0 0.0
    %114 = vmatprep.subr.mxu0 0.0
    %115 = vmatpush2.msra.mxu0 0.0
    %116 = vmatprep.subr.mxu0 0.0
    %117 = vmatpush2.msra.mxu0 0.0
    %118 = vmatprep.subr.mxu0 0.0
    %119 = vmatpush2.msra.mxu0 0.0
    %120 = vmatprep.subr.mxu0 0.0
    %121 = vmatpush2.msra.mxu0 0.0
    %122 = vmatprep.subr.mxu0 0.0
    %123 = vmatpush2.msra.mxu0 0.0
    %124 = vmatprep.subr.mxu0 0.0
    %125 = vmatpush2.msra.mxu0 0.0
    %126 = vmatprep.mubr.f32.mxu0 0.0
    %127 = vmatmul.mubr.f32.gmra.mxu0 %v45
    %v128 = vpop.f32.mrf.mxu0
    %v129 = vadd.f32 %v41, %v128
    %v130 = vpop.f32.mrf.mxu0
    %131 = vmatprep.mubr.f32.mxu0 0.0
    %132 = vmatmul.mubr.f32.gmra.mxu0 %v48
    %v133 = vpop.f32.mrf.mxu0
    %v134 = vadd.f32 %v41, %v133
    %v135 = vpop.f32.mrf.mxu0
    %136 = vmatprep.mubr.f32.mxu0 0.0
    %137 = vmatmul.mubr.f32.gmra.mxu0 %v51
    %v138 = vpop.f32.mrf.mxu0
    %v139 = vadd.f32 %v41, %v138
    %v140 = vpop.f32.mrf.mxu0
    %141 = vmatprep.mubr.f32.mxu0 0.0
    %142 = vmatmul.mubr.f32.gmra.mxu0 %v54
    %v143 = vpop.f32.mrf.mxu0
    %v144 = vadd.f32 %v41, %v143
    %v145 = vpop.f32.mrf.mxu0
    %146 = vmatprep.mubr.f32.mxu0 0.0
    %147 = vmatmul.mubr.f32.gmra.mxu0 %v57
    %v148 = vpop.f32.mrf.mxu0
    %v149 = vadd.f32 %v41, %v148
    %v150 = vpop.f32.mrf.mxu0
    %151 = vmatprep.mubr.f32.mxu0 0.0
    %152 = vmatmul.mubr.f32.gmra.mxu0 %v60
    %v153 = vpop.f32.mrf.mxu0
    %v154 = vadd.f32 %v41, %v153
    %v155 = vpop.f32.mrf.mxu0
    %156 = vdwg.mxu0
    %v157 = vmax.f32 %v129, 0.0
    %v158 = vmax.f32 %v134, 0.0
    %v159 = vmax.f32 %v139, 0.0
    %v160 = vmax.f32 %v144, 0.0
    %v161 = vmax.f32 %v149, 0.0
    %v162 = vmax.f32 %v154, 0.0
    %v163 = vld [vmem:[%s4] sm:$0xff]
    %v164 = vld [vmem:[%s4 + $0x8] sm:$0xff]
    %v165 = vld [vmem:[%s4 + $0x10] sm:$0xff]
    %v166 = vld [vmem:[%s4 + $0x18] sm:$0xff]
    %v167 = vld [vmem:[%s5] sm:$0x1]
    %v169 = vlaneseq
    %v170 = vshrl.u32 %v169, 7
    %v171 = vsub.s32 0, %v170
    %v172 = vrot.slane %v167, %v171
    %vm174 = vcmask 261120
    %v176 = vsel %vm174, %v157, 0
    %v179 = vsel %vm174, %v158, 0
    %v182 = vsel %vm174, %v159, 0
    %v185 = vsel %vm174, %v160, 0
    %v188 = vsel %vm174, %v161, 0
    %v191 = vsel %vm174, %v162, 0
    %193 = vmatprep.subr.mxu0 0.0
    %194 = vmatpush1.msra.mxu0 0.0
    %195 = vmatprep.subr.mxu0 0.0
    %196 = vmatpush1.msra.mxu0 0.0
    %197 = vmatprep.subr.mxu0 0.0
    %198 = vmatpush1.msra.mxu0 0.0
    %199 = vmatprep.subr.mxu0 0.0
    %200 = vmatpush1.msra.mxu0 0.0
    %201 = vmatprep.subr.mxu0 0.0
    %202 = vmatpush1.msra.mxu0 0.0
    %203 = vmatprep.subr.mxu0 0.0
    %204 = vmatpush1.msra.mxu0 0.0
    %205 = vmatprep.subr.mxu0 0.0
    %206 = vmatpush1.msra.mxu0 0.0
    %207 = vmatprep.subr.mxu0 0.0
    %208 = vmatpush1.msra.mxu0 0.0
    %209 = vmatprep.subr.mxu0 0.0
    %210 = vmatpush1.msra.mxu0 0.0
    %211 = vmatprep.subr.mxu0 0.0
    %212 = vmatpush1.msra.mxu0 0.0
    %213 = vmatprep.subr.mxu0 0.0
    %214 = vmatpush1.msra.mxu0 0.0
    %215 = vmatprep.subr.mxu0 0.0
    %216 = vmatpush1.msra.mxu0 0.0
    %217 = vmatprep.subr.mxu0 0.0
    %218 = vmatpush1.msra.mxu0 %v166
    %219 = vmatprep.subr.mxu0 0.0
    %220 = vmatpush1.msra.mxu0 %v165
    %221 = vmatprep.subr.mxu0 0.0
    %222 = vmatpush1.msra.mxu0 %v164
    %223 = vmatprep.subr.mxu0 0.0
    %224 = vmatpush1.msra.mxu0 %v163
    %225 = vmatprep.subr.mxu0 0.0
    %226 = vmatpush2.msra.mxu0 0.0
    %227 = vmatprep.subr.mxu0 0.0
    %228 = vmatpush2.msra.mxu0 0.0
    %229 = vmatprep.subr.mxu0 0.0
    %230 = vmatpush2.msra.mxu0 0.0
    %231 = vmatprep.subr.mxu0 0.0
    %232 = vmatpush2.msra.mxu0 0.0
    %233 = vmatprep.subr.mxu0 0.0
    %234 = vmatpush2.msra.mxu0 0.0
    %235 = vmatprep.subr.mxu0 0.0
    %236 = vmatpush2.msra.mxu0 0.0
    %237 = vmatprep.subr.mxu0 0.0
    %238 = vmatpush2.msra.mxu0 0.0
    %239 = vmatprep.subr.mxu0 0.0
    %240 = vmatpush2.msra.mxu0 0.0
    %241 = vmatprep.subr.mxu0 0.0
    %242 = vmatpush2.msra.mxu0 0.0
    %243 = vmatprep.subr.mxu0 0.0
    %244 = vmatpush2.msra.mxu0 0.0
    %245 = vmatprep.subr.mxu0 0.0
    %246 = vmatpush2.msra.mxu0 0.0
    %247 = vmatprep.subr.mxu0 0.0
    %248 = vmatpush2.msra.mxu0 0.0
    %249 = vmatprep.subr.mxu0 0.0
    %250 = vmatpush2.msra.mxu0 0.0
    %251 = vmatprep.subr.mxu0 0.0
    %252 = vmatpush2.msra.mxu0 0.0
    %253 = vmatprep.subr.mxu0 0.0
    %254 = vmatpush2.msra.mxu0 0.0
    %255 = vmatprep.subr.mxu0 0.0
    %256 = vmatpush2.msra.mxu0 0.0
    %257 = vmatprep.mubr.f32.mxu0 0.0
    %258 = vmatmul.mubr.f32.gmra.mxu0 %v176
    %v259 = vpop.f32.mrf.mxu0
    %v260 = vadd.f32 %v172, %v259
    %v261 = vpop.f32.mrf.mxu0
    %262 = vmatprep.mubr.f32.mxu0 0.0
    %263 = vmatmul.mubr.f32.gmra.mxu0 %v179
    %v264 = vpop.f32.mrf.mxu0
    %v265 = vadd.f32 %v172, %v264
    %v266 = vpop.f32.mrf.mxu0
    %267 = vmatprep.mubr.f32.mxu0 0.0
    %268 = vmatmul.mubr.f32.gmra.mxu0 %v182
    %v269 = vpop.f32.mrf.mxu0
    %v270 = vadd.f32 %v172, %v269
    %v271 = vpop.f32.mrf.mxu0
    %272 = vmatprep.mubr.f32.mxu0 0.0
    %273 = vmatmul.mubr.f32.gmra.mxu0 %v185
    %v274 = vpop.f32.mrf.mxu0
    %v275 = vadd.f32 %v172, %v274
    %v276 = vpop.f32.mrf.mxu0
    %277 = vmatprep.mubr.f32.mxu0 0.0
    %278 = vmatmul.mubr.f32.gmra.mxu0 %v188
    %v279 = vpop.f32.mrf.mxu0
    %v280 = vadd.f32 %v172, %v279
    %v281 = vpop.f32.mrf.mxu0
    %282 = vmatprep.mubr.f32.mxu0 0.0
    %283 = vmatmul.mubr.f32.gmra.mxu0 %v191
    %v284 = vpop.f32.mrf.mxu0
    %v285 = vadd.f32 %v172, %v284
    %v286 = vpop.f32.mrf.mxu0
    %287 = vdwg.mxu0
    %v288 = vmax.f32 %v260, 0.0
    %v289 = vmax.f32 %v265, 0.0
    %v290 = vmax.f32 %v270, 0.0
    %v291 = vmax.f32 %v275, 0.0
    %v292 = vmax.f32 %v280, 0.0
    %v293 = vmax.f32 %v285, 0.0
    %298 = vrot.lane.b32.xlu0 %v290, 112
    %v299 = vpop.permute.xlu0 %298
    %300 = vrot.lane.b32.xlu0 %v291, 112
    %v301 = vpop.permute.xlu0 %300
    %302 = vrot.lane.b32.xlu0 %v292, 112
    %v303 = vpop.permute.xlu0 %302
    %304 = vrot.lane.b32.xlu0 %v293, 112
    %v305 = vpop.permute.xlu0 %304
    %310 = vxpose.xlu0.b32.start [1/16] %v299, 128
    %311 = vxpose.xlu0.b32.cont [2/16] %v301, 128
    %312 = vxpose.xlu0.b32.cont [3/16] %v303, 128
    %313 = vxpose.xlu0.b32.cont [4/16] %v305, 128
    %314 = vxpose.xlu0.b32.cont [5/16] 0.0, 128
    %315 = vxpose.xlu0.b32.cont [6/16] 0.0, 128
    %316 = vxpose.xlu0.b32.cont [7/16] 0.0, 128
    %317 = vxpose.xlu0.b32.cont [8/16] 0.0, 128
    %318 = vxpose.xlu0.b32.cont [9/16] 0.0, 128
    %319 = vxpose.xlu0.b32.cont [10/16] 0.0, 128
    %320 = vxpose.xlu0.b32.cont [11/16] 0.0, 128
    %321 = vxpose.xlu0.b32.cont [12/16] 0.0, 128
    %322 = vxpose.xlu0.b32.cont [13/16] 0.0, 128
    %323 = vxpose.xlu0.b32.cont [14/16] 0.0, 128
    %324 = vxpose.xlu0.b32.cont [15/16] 0.0, 128
    %325 = vxpose.xlu0.b32.end [16/16] 0.0, 128
    %v326 = vpop.trf.xlu0
    %v327 = vpop.trf.xlu0
    %v328 = vpop.trf.xlu0
    %v329 = vpop.trf.xlu0
    %v330 = vpop.trf.xlu0
    %v331 = vpop.trf.xlu0
    %v332 = vpop.trf.xlu0
    %v333 = vpop.trf.xlu0
    %v334 = vpop.trf.xlu0
    %v335 = vpop.trf.xlu0
    %v336 = vpop.trf.xlu0
    %v337 = vpop.trf.xlu0
    %v338 = vpop.trf.xlu0
    %v339 = vpop.trf.xlu0
    %v340 = vpop.trf.xlu0
    %v341 = vpop.trf.xlu0
    %v342 = vlaneseq
    %v343 = vshrl.u32 %v342, 7
    %v344 = vadd.s32 %v343, 8
    %v345 = vld [vmem:[%s0] sm:$0x1]
    %v346 = vlaneseq
    %v347 = vshrl.u32 %v346, 7
    %v348 = vsub.s32 0, %v347
    %v349 = vrot.slane %v345, %v348
    %vm350 = vcmp.eq.s32.totalorder %v343, %v349
    %vm351 = vcmp.eq.s32.totalorder %v344, %v349
    %v352 = vsel %vm350, 1, 0
    %v353 = vsel %vm351, 1, 0
    %v354 = vcombine.high %v352, %v352
    %v356 = vunpack.c.l.s4 1966171168
    %v357 = vunpack.c.0.s8 %v356
    %v358 = vlaneseq
    %v359 = vshrl.u32 %v358, 7
    %v360 = vsub.s32 %v357, %v359
    %v361 = vrot.slane %v352, %v360
    %v363 = vunpack.c.l.s4 1966171168
    %v364 = vunpack.c.0.s8 %v363
    %v365 = vlaneseq
    %v366 = vshrl.u32 %v365, 7
    %v367 = vsub.s32 %v364, %v366
    %v368 = vrot.slane %v354, %v367
    %v369 = vcombine.high %v361, %v361
    %v370 = vcombine.high %v368, %v368
    %v372 = vunpack.c.l.s4 1966171168
    %v373 = vunpack.c.0.s8 %v372
    %v374 = vlaneseq
    %v375 = vshrl.u32 %v374, 7
    %v376 = vsub.s32 %v373, %v375
    %v377 = vrot.slane %v361, %v376
    %v379 = vunpack.c.l.s4 1966171168
    %v380 = vunpack.c.0.s8 %v379
    %v381 = vlaneseq
    %v382 = vshrl.u32 %v381, 7
    %v383 = vsub.s32 %v380, %v382
    %v384 = vrot.slane %v368, %v383
    %v386 = vunpack.c.l.s4 1966171168
    %v387 = vunpack.c.0.s8 %v386
    %v388 = vlaneseq
    %v389 = vshrl.u32 %v388, 7
    %v390 = vsub.s32 %v387, %v389
    %v391 = vrot.slane %v369, %v390
    %v393 = vunpack.c.l.s4 1966171168
    %v394 = vunpack.c.0.s8 %v393
    %v395 = vlaneseq
    %v396 = vshrl.u32 %v395, 7
    %v397 = vsub.s32 %v394, %v396
    %v398 = vrot.slane %v370, %v397
    %v399 = vcombine.high %v377, %v377
    %v400 = vcombine.high %v384, %v384
    %v401 = vcombine.high %v391, %v391
    %v402 = vcombine.high %v398, %v398
    %v403 = vcombine.high %v353, %v353
    %v405 = vunpack.c.l.s4 1966171168
    %v406 = vunpack.c.0.s8 %v405
    %v407 = vlaneseq
    %v408 = vshrl.u32 %v407, 7
    %v409 = vsub.s32 %v406, %v408
    %v410 = vrot.slane %v353, %v409
    %v412 = vunpack.c.l.s4 1966171168
    %v413 = vunpack.c.0.s8 %v412
    %v414 = vlaneseq
    %v415 = vshrl.u32 %v414, 7
    %v416 = vsub.s32 %v413, %v415
    %v417 = vrot.slane %v403, %v416
    %v418 = vcombine.high %v410, %v410
    %v419 = vcombine.high %v417, %v417
    %v421 = vunpack.c.l.s4 1966171168
    %v422 = vunpack.c.0.s8 %v421
    %v423 = vlaneseq
    %v424 = vshrl.u32 %v423, 7
    %v425 = vsub.s32 %v422, %v424
    %v426 = vrot.slane %v410, %v425
    %v428 = vunpack.c.l.s4 1966171168
    %v429 = vunpack.c.0.s8 %v428
    %v430 = vlaneseq
    %v431 = vshrl.u32 %v430, 7
    %v432 = vsub.s32 %v429, %v431
    %v433 = vrot.slane %v417, %v432
    %v435 = vunpack.c.l.s4 1966171168
    %v436 = vunpack.c.0.s8 %v435
    %v437 = vlaneseq
    %v438 = vshrl.u32 %v437, 7
    %v439 = vsub.s32 %v436, %v438
    %v440 = vrot.slane %v418, %v439
    %v442 = vunpack.c.l.s4 1966171168
    %v443 = vunpack.c.0.s8 %v442
    %v444 = vlaneseq
    %v445 = vshrl.u32 %v444, 7
    %v446 = vsub.s32 %v443, %v445
    %v447 = vrot.slane %v419, %v446
    %v448 = vcombine.high %v426, %v426
    %v449 = vcombine.high %v433, %v433
    %v450 = vcombine.high %v440, %v440
    %v451 = vcombine.high %v447, %v447
    %vm452 = vcmp.ne.s32.totalorder %v377, 0
    %vm453 = vcmp.ne.s32.totalorder %v391, 0
    %vm454 = vcmp.ne.s32.totalorder %v399, 0
    %vm455 = vcmp.ne.s32.totalorder %v401, 0
    %vm456 = vcmp.ne.s32.totalorder %v384, 0
    %vm457 = vcmp.ne.s32.totalorder %v398, 0
    %vm458 = vcmp.ne.s32.totalorder %v400, 0
    %vm459 = vcmp.ne.s32.totalorder %v402, 0
    %vm460 = vcmp.ne.s32.totalorder %v426, 0
    %vm461 = vcmp.ne.s32.totalorder %v440, 0
    %vm462 = vcmp.ne.s32.totalorder %v448, 0
    %vm463 = vcmp.ne.s32.totalorder %v450, 0
    %vm464 = vcmp.ne.s32.totalorder %v433, 0
    %vm465 = vcmp.ne.s32.totalorder %v447, 0
    %vm466 = vcmp.ne.s32.totalorder %v449, 0
    %vm467 = vcmp.ne.s32.totalorder %v451, 0
    %v468 = vsel %vm452, 1, 0
    %v469 = vsel %vm453, 1, 0
    %v470 = vsel %vm454, 1, 0
    %v471 = vsel %vm455, 1, 0
    %v472 = vsel %vm456, 1, 0
    %v473 = vsel %vm457, 1, 0
    %v474 = vsel %vm458, 1, 0
    %v475 = vsel %vm459, 1, 0
    %v476 = vsel %vm460, 1, 0
    %v477 = vsel %vm461, 1, 0
    %v478 = vsel %vm462, 1, 0
    %v479 = vsel %vm463, 1, 0
    %v480 = vsel %vm464, 1, 0
    %v481 = vsel %vm465, 1, 0
    %v482 = vsel %vm466, 1, 0
    %v483 = vsel %vm467, 1, 0
    %v484 = vlaneseq
    %v485 = vshrl.u32 %v484, 7
    %v486 = vsub.s32 0, %v485
    %v487 = vrot.slane %v468, %v486
    %v488 = vlaneseq
    %v489 = vshrl.u32 %v488, 7
    %v490 = vsub.s32 0, %v489
    %v491 = vrot.slane %v469, %v490
    %v492 = vlaneseq
    %v493 = vshrl.u32 %v492, 7
    %v494 = vsub.s32 0, %v493
    %v495 = vrot.slane %v470, %v494
    %v496 = vlaneseq
    %v497 = vshrl.u32 %v496, 7
    %v498 = vsub.s32 0, %v497
    %v499 = vrot.slane %v471, %v498
    %v500 = vlaneseq
    %v501 = vshrl.u32 %v500, 7
    %v502 = vsub.s32 0, %v501
    %v503 = vrot.slane %v472, %v502
    %v504 = vlaneseq
    %v505 = vshrl.u32 %v504, 7
    %v506 = vsub.s32 0, %v505
    %v507 = vrot.slane %v473, %v506
    %v508 = vlaneseq
    %v509 = vshrl.u32 %v508, 7
    %v510 = vsub.s32 0, %v509
    %v511 = vrot.slane %v474, %v510
    %v512 = vlaneseq
    %v513 = vshrl.u32 %v512, 7
    %v514 = vsub.s32 0, %v513
    %v515 = vrot.slane %v475, %v514
    %v516 = vlaneseq
    %v517 = vshrl.u32 %v516, 7
    %v518 = vsub.s32 0, %v517
    %v519 = vrot.slane %v476, %v518
    %v520 = vlaneseq
    %v521 = vshrl.u32 %v520, 7
    %v522 = vsub.s32 0, %v521
    %v523 = vrot.slane %v477, %v522
    %v524 = vlaneseq
    %v525 = vshrl.u32 %v524, 7
    %v526 = vsub.s32 0, %v525
    %v527 = vrot.slane %v478, %v526
    %v528 = vlaneseq
    %v529 = vshrl.u32 %v528, 7
    %v530 = vsub.s32 0, %v529
    %v531 = vrot.slane %v479, %v530
    %v532 = vlaneseq
    %v533 = vshrl.u32 %v532, 7
    %v534 = vsub.s32 0, %v533
    %v535 = vrot.slane %v480, %v534
    %v536 = vlaneseq
    %v537 = vshrl.u32 %v536, 7
    %v538 = vsub.s32 0, %v537
    %v539 = vrot.slane %v481, %v538
    %v540 = vlaneseq
    %v541 = vshrl.u32 %v540, 7
    %v542 = vsub.s32 0, %v541
    %v543 = vrot.slane %v482, %v542
    %v544 = vlaneseq
    %v545 = vshrl.u32 %v544, 7
    %v546 = vsub.s32 0, %v545
    %v547 = vrot.slane %v483, %v546
    %vm548 = vcmp.eq.s32.totalorder %v487, 1
    %vm549 = vcmp.eq.s32.totalorder %v491, 1
    %vm550 = vcmp.eq.s32.totalorder %v495, 1
    %vm551 = vcmp.eq.s32.totalorder %v499, 1
    %vm552 = vcmp.eq.s32.totalorder %v503, 1
    %vm553 = vcmp.eq.s32.totalorder %v507, 1
    %vm554 = vcmp.eq.s32.totalorder %v511, 1
    %vm555 = vcmp.eq.s32.totalorder %v515, 1
    %vm556 = vcmp.eq.s32.totalorder %v519, 1
    %vm557 = vcmp.eq.s32.totalorder %v523, 1
    %vm558 = vcmp.eq.s32.totalorder %v527, 1
    %vm559 = vcmp.eq.s32.totalorder %v531, 1
    %vm560 = vcmp.eq.s32.totalorder %v535, 1
    %vm561 = vcmp.eq.s32.totalorder %v539, 1
    %vm562 = vcmp.eq.s32.totalorder %v543, 1
    %vm563 = vcmp.eq.s32.totalorder %v547, 1
    %v564 = vsel %vm548, %v326, 0.0
    %v565 = vsel %vm548, %v327, 0.0
    %v566 = vsel %vm549, %v326, 0.0
    %v567 = vsel %vm549, %v327, 0.0
    %v568 = vsel %vm550, %v326, 0.0
    %v569 = vsel %vm550, %v327, 0.0
    %v570 = vsel %vm551, %v326, 0.0
    %v571 = vsel %vm551, %v327, 0.0
    %v572 = vsel %vm552, %v326, 0.0
    %v573 = vsel %vm552, %v327, 0.0
    %v574 = vsel %vm553, %v326, 0.0
    %v575 = vsel %vm553, %v327, 0.0
    %v576 = vsel %vm554, %v326, 0.0
    %v577 = vsel %vm554, %v327, 0.0
    %v578 = vsel %vm555, %v326, 0.0
    %v579 = vsel %vm555, %v327, 0.0
    %v580 = vsel %vm556, %v326, 0.0
    %v581 = vsel %vm556, %v327, 0.0
    %v582 = vsel %vm557, %v326, 0.0
    %v583 = vsel %vm557, %v327, 0.0
    %v584 = vsel %vm558, %v326, 0.0
    %v585 = vsel %vm558, %v327, 0.0
    %v586 = vsel %vm559, %v326, 0.0
    %v587 = vsel %vm559, %v327, 0.0
    %v588 = vsel %vm560, %v326, 0.0
    %v589 = vsel %vm560, %v327, 0.0
    %v590 = vsel %vm561, %v326, 0.0
    %v591 = vsel %vm561, %v327, 0.0
    %v592 = vsel %vm562, %v326, 0.0
    %v593 = vsel %vm562, %v327, 0.0
    %v594 = vsel %vm563, %v326, 0.0
    %v595 = vsel %vm563, %v327, 0.0
    %v596 = vsel %vm174, %v564, -inf
    %597 = vmax.xlane.f32.xlu0 %v596
    %v598 = vpop.xlane.xlu0 %597
    %v599 = vsel %vm174, %v565, -inf
    %600 = vmax.xlane.f32.xlu0 %v599
    %v601 = vpop.xlane.xlu0 %600
    %v602 = vsel %vm174, %v566, -inf
    %603 = vmax.xlane.f32.xlu0 %v602
    %v604 = vpop.xlane.xlu0 %603
    %v605 = vsel %vm174, %v567, -inf
    %606 = vmax.xlane.f32.xlu0 %v605
    %v607 = vpop.xlane.xlu0 %606
    %v608 = vsel %vm174, %v568, -inf
    %609 = vmax.xlane.f32.xlu0 %v608
    %v610 = vpop.xlane.xlu0 %609
    %v611 = vsel %vm174, %v569, -inf
    %612 = vmax.xlane.f32.xlu0 %v611
    %v613 = vpop.xlane.xlu0 %612
    %v614 = vsel %vm174, %v570, -inf
    %615 = vmax.xlane.f32.xlu0 %v614
    %v616 = vpop.xlane.xlu0 %615
    %v617 = vsel %vm174, %v571, -inf
    %618 = vmax.xlane.f32.xlu0 %v617
    %v619 = vpop.xlane.xlu0 %618
    %v620 = vsel %vm174, %v572, -inf
    %621 = vmax.xlane.f32.xlu0 %v620
    %v622 = vpop.xlane.xlu0 %621
    %v623 = vsel %vm174, %v573, -inf
    %624 = vmax.xlane.f32.xlu0 %v623
    %v625 = vpop.xlane.xlu0 %624
    %v626 = vsel %vm174, %v574, -inf
    %627 = vmax.xlane.f32.xlu0 %v626
    %v628 = vpop.xlane.xlu0 %627
    %v629 = vsel %vm174, %v575, -inf
    %630 = vmax.xlane.f32.xlu0 %v629
    %v631 = vpop.xlane.xlu0 %630
    %v632 = vsel %vm174, %v576, -inf
    %633 = vmax.xlane.f32.xlu0 %v632
    %v634 = vpop.xlane.xlu0 %633
    %v635 = vsel %vm174, %v577, -inf
    %636 = vmax.xlane.f32.xlu0 %v635
    %v637 = vpop.xlane.xlu0 %636
    %v638 = vsel %vm174, %v578, -inf
    %639 = vmax.xlane.f32.xlu0 %v638
    %v640 = vpop.xlane.xlu0 %639
    %v641 = vsel %vm174, %v579, -inf
    %642 = vmax.xlane.f32.xlu0 %v641
    %v643 = vpop.xlane.xlu0 %642
    %v644 = vsel %vm174, %v580, -inf
    %645 = vmax.xlane.f32.xlu0 %v644
    %v646 = vpop.xlane.xlu0 %645
    %v647 = vsel %vm174, %v581, -inf
    %648 = vmax.xlane.f32.xlu0 %v647
    %v649 = vpop.xlane.xlu0 %648
    %v650 = vsel %vm174, %v582, -inf
    %651 = vmax.xlane.f32.xlu0 %v650
    %v652 = vpop.xlane.xlu0 %651
    %v653 = vsel %vm174, %v583, -inf
    %654 = vmax.xlane.f32.xlu0 %v653
    %v655 = vpop.xlane.xlu0 %654
    %v656 = vsel %vm174, %v584, -inf
    %657 = vmax.xlane.f32.xlu0 %v656
    %v658 = vpop.xlane.xlu0 %657
    %v659 = vsel %vm174, %v585, -inf
    %660 = vmax.xlane.f32.xlu0 %v659
    %v661 = vpop.xlane.xlu0 %660
    %v662 = vsel %vm174, %v586, -inf
    %663 = vmax.xlane.f32.xlu0 %v662
    %v664 = vpop.xlane.xlu0 %663
    %v665 = vsel %vm174, %v587, -inf
    %666 = vmax.xlane.f32.xlu0 %v665
    %v667 = vpop.xlane.xlu0 %666
    %v668 = vsel %vm174, %v588, -inf
    %669 = vmax.xlane.f32.xlu0 %v668
    %v670 = vpop.xlane.xlu0 %669
    %v671 = vsel %vm174, %v589, -inf
    %672 = vmax.xlane.f32.xlu0 %v671
    %v673 = vpop.xlane.xlu0 %672
    %v674 = vsel %vm174, %v590, -inf
    %675 = vmax.xlane.f32.xlu0 %v674
    %v676 = vpop.xlane.xlu0 %675
    %v677 = vsel %vm174, %v591, -inf
    %678 = vmax.xlane.f32.xlu0 %v677
    %v679 = vpop.xlane.xlu0 %678
    %v680 = vsel %vm174, %v592, -inf
    %681 = vmax.xlane.f32.xlu0 %v680
    %v682 = vpop.xlane.xlu0 %681
    %v683 = vsel %vm174, %v593, -inf
    %684 = vmax.xlane.f32.xlu0 %v683
    %v685 = vpop.xlane.xlu0 %684
    %v686 = vsel %vm174, %v594, -inf
    %687 = vmax.xlane.f32.xlu0 %v686
    %v688 = vpop.xlane.xlu0 %687
    %v689 = vsel %vm174, %v595, -inf
    %690 = vmax.xlane.f32.xlu0 %v689
    %v691 = vpop.xlane.xlu0 %690
    %v724 = vlaneseq
    %v725 = vand.u32 %v724, 127
    %v726 = vadd.s32 %v725, 4294967280
    %v727 = vlaneseq
    %v728 = vshrl.u32 %v727, 7
    %v729 = vsub.s32 %v726, %v728
    %v730 = vrot.slane %v598, %v729
    %v731 = vadd.s32 %v725, 4294967272
    %v732 = vlaneseq
    %v733 = vshrl.u32 %v732, 7
    %v734 = vsub.s32 %v731, %v733
    %v735 = vrot.slane %v601, %v734
    %vm736 = vcmask 261312
    %v737 = vsel %vm736, %v735, %v730
    %v738 = vlaneseq
    %v739 = vshrl.u32 %v738, 7
    %v740 = vsub.s32 %v726, %v739
    %v741 = vrot.slane %v604, %v740
    %v742 = vlaneseq
    %v743 = vshrl.u32 %v742, 7
    %v744 = vsub.s32 %v731, %v743
    %v745 = vrot.slane %v607, %v744
    %v746 = vsel %vm736, %v745, %v741
    %v747 = vlaneseq
    %v748 = vshrl.u32 %v747, 7
    %v749 = vsub.s32 %v726, %v748
    %v750 = vrot.slane %v610, %v749
    %v751 = vlaneseq
    %v752 = vshrl.u32 %v751, 7
    %v753 = vsub.s32 %v731, %v752
    %v754 = vrot.slane %v613, %v753
    %v755 = vsel %vm736, %v754, %v750
    %v756 = vlaneseq
    %v757 = vshrl.u32 %v756, 7
    %v758 = vsub.s32 %v726, %v757
    %v759 = vrot.slane %v616, %v758
    %v760 = vlaneseq
    %v761 = vshrl.u32 %v760, 7
    %v762 = vsub.s32 %v731, %v761
    %v763 = vrot.slane %v619, %v762
    %v764 = vsel %vm736, %v763, %v759
    %v765 = vlaneseq
    %v766 = vshrl.u32 %v765, 7
    %v767 = vsub.s32 %v726, %v766
    %v768 = vrot.slane %v622, %v767
    %v769 = vlaneseq
    %v770 = vshrl.u32 %v769, 7
    %v771 = vsub.s32 %v731, %v770
    %v772 = vrot.slane %v625, %v771
    %v773 = vsel %vm736, %v772, %v768
    %v774 = vlaneseq
    %v775 = vshrl.u32 %v774, 7
    %v776 = vsub.s32 %v726, %v775
    %v777 = vrot.slane %v628, %v776
    %v778 = vlaneseq
    %v779 = vshrl.u32 %v778, 7
    %v780 = vsub.s32 %v731, %v779
    %v781 = vrot.slane %v631, %v780
    %v782 = vsel %vm736, %v781, %v777
    %v783 = vlaneseq
    %v784 = vshrl.u32 %v783, 7
    %v785 = vsub.s32 %v726, %v784
    %v786 = vrot.slane %v634, %v785
    %v787 = vlaneseq
    %v788 = vshrl.u32 %v787, 7
    %v789 = vsub.s32 %v731, %v788
    %v790 = vrot.slane %v637, %v789
    %v791 = vsel %vm736, %v790, %v786
    %v792 = vlaneseq
    %v793 = vshrl.u32 %v792, 7
    %v794 = vsub.s32 %v726, %v793
    %v795 = vrot.slane %v640, %v794
    %v796 = vlaneseq
    %v797 = vshrl.u32 %v796, 7
    %v798 = vsub.s32 %v731, %v797
    %v799 = vrot.slane %v643, %v798
    %v800 = vsel %vm736, %v799, %v795
    %v801 = vlaneseq
    %v802 = vshrl.u32 %v801, 7
    %v803 = vsub.s32 %v726, %v802
    %v804 = vrot.slane %v646, %v803
    %v805 = vlaneseq
    %v806 = vshrl.u32 %v805, 7
    %v807 = vsub.s32 %v731, %v806
    %v808 = vrot.slane %v649, %v807
    %v809 = vsel %vm736, %v808, %v804
    %v810 = vlaneseq
    %v811 = vshrl.u32 %v810, 7
    %v812 = vsub.s32 %v726, %v811
    %v813 = vrot.slane %v652, %v812
    %v814 = vlaneseq
    %v815 = vshrl.u32 %v814, 7
    %v816 = vsub.s32 %v731, %v815
    %v817 = vrot.slane %v655, %v816
    %v818 = vsel %vm736, %v817, %v813
    %v819 = vlaneseq
    %v820 = vshrl.u32 %v819, 7
    %v821 = vsub.s32 %v726, %v820
    %v822 = vrot.slane %v658, %v821
    %v823 = vlaneseq
    %v824 = vshrl.u32 %v823, 7
    %v825 = vsub.s32 %v731, %v824
    %v826 = vrot.slane %v661, %v825
    %v827 = vsel %vm736, %v826, %v822
    %v828 = vlaneseq
    %v829 = vshrl.u32 %v828, 7
    %v830 = vsub.s32 %v726, %v829
    %v831 = vrot.slane %v664, %v830
    %v832 = vlaneseq
    %v833 = vshrl.u32 %v832, 7
    %v834 = vsub.s32 %v731, %v833
    %v835 = vrot.slane %v667, %v834
    %v836 = vsel %vm736, %v835, %v831
    %v837 = vlaneseq
    %v838 = vshrl.u32 %v837, 7
    %v839 = vsub.s32 %v726, %v838
    %v840 = vrot.slane %v670, %v839
    %v841 = vlaneseq
    %v842 = vshrl.u32 %v841, 7
    %v843 = vsub.s32 %v731, %v842
    %v844 = vrot.slane %v673, %v843
    %v845 = vsel %vm736, %v844, %v840
    %v846 = vlaneseq
    %v847 = vshrl.u32 %v846, 7
    %v848 = vsub.s32 %v726, %v847
    %v849 = vrot.slane %v676, %v848
    %v850 = vlaneseq
    %v851 = vshrl.u32 %v850, 7
    %v852 = vsub.s32 %v731, %v851
    %v853 = vrot.slane %v679, %v852
    %v854 = vsel %vm736, %v853, %v849
    %v855 = vlaneseq
    %v856 = vshrl.u32 %v855, 7
    %v857 = vsub.s32 %v726, %v856
    %v858 = vrot.slane %v682, %v857
    %v859 = vlaneseq
    %v860 = vshrl.u32 %v859, 7
    %v861 = vsub.s32 %v731, %v860
    %v862 = vrot.slane %v685, %v861
    %v863 = vsel %vm736, %v862, %v858
    %v864 = vlaneseq
    %v865 = vshrl.u32 %v864, 7
    %v866 = vsub.s32 %v726, %v865
    %v867 = vrot.slane %v688, %v866
    %v868 = vlaneseq
    %v869 = vshrl.u32 %v868, 7
    %v870 = vsub.s32 %v731, %v869
    %v871 = vrot.slane %v691, %v870
    %v872 = vsel %vm736, %v871, %v867
    %vm873 = vcmask 1041409
    %v874 = vsel %vm873, %v746, %v737
    %vm875 = vcmask 1042434
    %v876 = vsel %vm875, %v755, %v874
    %vm877 = vcmask 1043459
    %v878 = vsel %vm877, %v764, %v876
    %vm879 = vcmask 1044484
    %v880 = vsel %vm879, %v773, %v878
    %vm881 = vcmask 1045509
    %v882 = vsel %vm881, %v782, %v880
    %vm883 = vcmask 1046534
    %v884 = vsel %vm883, %v791, %v882
    %vm885 = vcmask 1047559
    %v886 = vsel %vm885, %v800, %v884
    %v887 = vsel %vm873, %v818, %v809
    %v888 = vsel %vm875, %v827, %v887
    %v889 = vsel %vm877, %v836, %v888
    %v890 = vsel %vm879, %v845, %v889
    %v891 = vsel %vm881, %v854, %v890
    %v892 = vsel %vm883, %v863, %v891
    %v893 = vsel %vm885, %v872, %v892
    %v896 = vsel %vm43, %v288, %v886
    %v897 = vsel %vm43, %v289, %v893
    %898 = vst.msk [vmem:[#allocation3] sm:$0xff] %vm174, %v896
    %899 = vst.msk [vmem:[#allocation3 + $0x8] sm:$0xff] %vm174, %v897
    // Predicated region
    $region30: #{tpu_custom_call.1} parent=1 // pred_check
      _
    $region31: #{tpu_custom_call.1} parent=1 // pred_check_branch
      %901 = sbr.rel (0) target = $region33
    $region32: #{tpu_custom_call.1} parent=1 // pred_region
      %s903 = ssub.s32 256, 256
      %904 = vsyncadd [#allocation4], %s903
      %s905 = sshll.u32 [#allocation3], 4
      %s906 = int_to_ptr.vmem [resolvable:$true] %s905
      %911 = dma.vmem_to_hbm [thread:$0]  %s906, 256, %s7, [#allocation4], 128, 128, 8
    $region33: #{tpu_custom_call.1} parent=1 // pred_fallthru
      _
    // Predicated region
    $region34: #{tpu_custom_call.1} parent=1 // pred_check
      _
    $region35: #{tpu_custom_call.1} parent=1 // pred_check_branch
      %913 = sbr.rel (0) target = $region37
    $region36: #{tpu_custom_call.1} parent=1 // pred_region
      %914 = dma.done [#allocation4], 256
    $region37: #{tpu_custom_call.1} parent=1 // pred_fallthru
      _
    %915 = vsyncpa [#allocation4], 1

</llo_original>
